<compile_context>
chip_gen: v6e
topology: v6e:2x2x1
jax: 0.10.0
libtpu: 0.0.40
codegen_flags: <defaults>
</compile_context>

<pallas_src>
import functools

import jax
import jax.numpy as jnp
from jax import lax
from jax.experimental import pallas as pl
from jax.experimental.pallas import tpu as pltpu

_LANES = 128
_PAIR = 2 * _LANES        # two interleaved 128-lane groups per loop step


def _sigmoid(x):
    # sigmoid(x) == 0.5 * tanh(0.5 * x) + 0.5  -> one EUP op instead of exp+recip.
    return 0.5 * jnp.tanh(0.5 * x) + 0.5


def _dice_small_kernel(t_ref, p_ref, out_ref, *, eps):
    """Whole-HW-in-one-block path (HW < 256): tile is tiny, full-tile f32 is fine."""
    t = t_ref[...].astype(jnp.float32)
    p = _sigmoid(p_ref[...].astype(jnp.float32))
    inter = jnp.sum(t * p, axis=1, keepdims=True)
    union = jnp.sum(t + p, axis=1, keepdims=True)
    dice = jnp.clip((2.0 * inter + eps) / (union + eps), 0.0, 1.0)
    out_ref[...] = jnp.broadcast_to(1.0 - dice, out_ref.shape)


def _dice_stream_kernel(t_ref, p_ref, out_ref, inter_acc, union_acc, *,
                        eps, hw, tk, tm):
    """Streaming path: rows tiled by tm, HW reduction tiled by tk (last grid axis)."""
    k = pl.program_id(1)
    nk = pl.num_programs(1)

    @pl.when(k == 0)
    def _init():
        inter_acc[...] = jnp.zeros_like(inter_acc)
        union_acc[...] = jnp.zeros_like(union_acc)

    n_pairs = tk // _PAIR

    def _accumulate(mask_cols):
        if mask_cols:
            # Hoisted out of the loop (broadcast_in_dim is not CSE'd).
            lane = lax.broadcasted_iota(jnp.int32, (tm, _LANES), 1)
            base_col = k * tk

        def body(g, carry):
            ia, ib, ua, ub = carry
            off0 = pl.multiple_of(g * _PAIR, _LANES)
            off1 = pl.multiple_of(g * _PAIR + _LANES, _LANES)
            # Per-slice load + upcast + sigmoid: no full-tile f32 temporaries.
            t0 = t_ref[:, pl.ds(off0, _LANES)].astype(jnp.float32)
            t1 = t_ref[:, pl.ds(off1, _LANES)].astype(jnp.float32)
            p0 = _sigmoid(p_ref[:, pl.ds(off0, _LANES)].astype(jnp.float32))
            p1 = _sigmoid(p_ref[:, pl.ds(off1, _LANES)].astype(jnp.float32))
            if mask_cols:
                # Only the last K tile is masked (out-of-bounds lanes hold
                # undefined data from the partial boundary block).
                c0 = base_col + g * _PAIR + lane
                c1 = c0 + _LANES
                v0 = c0 < hw
                v1 = c1 < hw
                t0 = jnp.where(v0, t0, 0.0)
                p0 = jnp.where(v0, p0, 0.0)
                t1 = jnp.where(v1, t1, 0.0)
                p1 = jnp.where(v1, p1, 0.0)
            # Two independent partial accumulators per quantity -> VALUs pipeline.
            return (ia + t0 * p0, ib + t1 * p1, ua + (t0 + p0), ub + (t1 + p1))

        zeros = jnp.zeros((tm, _LANES), jnp.float32)
        ia, ib, ua, ub = lax.fori_loop(0, n_pairs, body,
                                       (zeros, zeros, zeros, zeros),
                                       unroll=min(4, n_pairs))
        inter_acc[...] += ia + ib
        union_acc[...] += ua + ub

    if hw % tk == 0:
        _accumulate(False)           # never any padded lanes -> no mask anywhere
    else:
        @pl.when(k < nk - 1)
        def _full_tiles():
            _accumulate(False)

        @pl.when(k == nk - 1)
        def _tail_tile():
            _accumulate(True)

    @pl.when(k == nk - 1)
    def _finalize():
        inter = jnp.sum(inter_acc[...], axis=1, keepdims=True)    # (tm, 1)
        union = jnp.sum(union_acc[...], axis=1, keepdims=True)    # (tm, 1)
        dice = jnp.clip((2.0 * inter + eps) / (union + eps), 0.0, 1.0)
        out_ref[...] = jnp.broadcast_to(1.0 - dice, out_ref.shape)


def dice_loss(y_true, y_pred, *, eps=1e-6, tm=None, tk=None,
              tile_bytes=2 * 1024 * 1024):
    """Binary Dice loss == DiceLoss(num_classes=1, from_logits=True, reduction='mean')."""
    N, C, H, W = y_true.shape
    assert y_pred.shape == (N, C, H, W)
    NC, HW = N * C, H * W

    # Keep native dtypes (bf16 / f32 / int mask) — upcast happens in-kernel.
    t2 = y_true.reshape(NC, HW)
    p2 = y_pred.reshape(NC, HW)

    # Small row tile: accumulators stay 1-4 vregs; NC (= N*C) is tiny for dice.
    # (If int8/uint8 masks are ever used, prefer tm >= 32 for native packing.)
    if tm is None:
        tm = NC if NC <= 32 else 32
    tm = min(tm, NC)
    if tm < NC and tm % 8 != 0:
        tm = max(8, (tm // 8) * 8)
    grid_rows = pl.cdiv(NC, tm)

    out_shape = jax.ShapeDtypeStruct((NC, _LANES), jnp.float32)
    itemsize = max(jnp.dtype(t2.dtype).itemsize, jnp.dtype(p2.dtype).itemsize)

    if HW < _PAIR:
        # Tiny spatial extent: one block covers all of HW (block dims == array dims).
        out = pl.pallas_call(
            functools.partial(_dice_small_kernel, eps=eps),
            out_shape=out_shape,
            grid=(grid_rows,),
            in_specs=[pl.BlockSpec((tm, HW), lambda i: (i, 0)),
                      pl.BlockSpec((tm, HW), lambda i: (i, 0))],
            out_specs=pl.BlockSpec((tm, _LANES), lambda i: (i, 0)),
            compiler_params=pltpu.CompilerParams(
                dimension_semantics=("parallel",)),
        )(t2, p2)
    else:
        if tk is None:
            # ~2 MiB per input tile: 2 inputs x 2 pipeline buffers x 2 MiB = 8 MiB
            # live, inside the scoped-VMEM default on v5e/v6e/v7x.
            tk = tile_bytes // (tm * itemsize)
        tk = max(_PAIR, (tk // _PAIR) * _PAIR)
        tk = min(tk, (HW // _PAIR) * _PAIR)   # never exceed the array extent
        grid = (grid_rows, pl.cdiv(HW, tk))

        bytes_accessed = int(t2.size * t2.dtype.itemsize
                             + p2.size * p2.dtype.itemsize
                             + NC * _LANES * 4)
        out = pl.pallas_call(
            functools.partial(_dice_stream_kernel, eps=eps, hw=HW, tk=tk, tm=tm),
            out_shape=out_shape,
            grid=grid,
            in_specs=[pl.BlockSpec((tm, tk), lambda i, k: (i, k)),
                      pl.BlockSpec((tm, tk), lambda i, k: (i, k))],
            out_specs=pl.BlockSpec((tm, _LANES), lambda i, k: (i, 0)),
            scratch_shapes=[pltpu.VMEM((tm, _LANES), jnp.float32),   # intersection
                            pltpu.VMEM((tm, _LANES), jnp.float32)],  # union
            compiler_params=pltpu.CompilerParams(
                # Row axis owns its output block -> megacore-shardable; the
                # reduction axis carries the accumulators -> "arbitrary".
                dimension_semantics=("parallel", "arbitrary")),
            cost_estimate=pl.CostEstimate(
                flops=6 * NC * HW,
                transcendentals=NC * HW,
                bytes_accessed=bytes_accessed),
        )(t2, p2)

    per_row_loss = out[:, 0]          # lane-dense output; column 0 holds the loss
    return jnp.mean(per_row_loss)     # reduction='mean'


def _reference(y_true, y_pred, eps=1e-6):
    t = y_true.astype(jnp.float32)
    p = jax.nn.sigmoid(y_pred.astype(jnp.float32))
    inter = jnp.sum(t * p, axis=(2, 3))
    union = jnp.sum(t, axis=(2, 3)) + jnp.sum(p, axis=(2, 3))
    dice = jnp.clip((2.0 * inter + eps) / (union + eps), 0.0, 1.0)
    return jnp.mean(1.0 - dice)


if __name__ == "__main__":
    key = jax.random.PRNGKey(0)
    k1, k2, k3, k4, k5, k6 = jax.random.split(key, 6)

    # Case 1: bf16 logits + bf16 0/1 mask, HW=256 (single aligned K tile).
    N, C, H, W = 2, 1, 16, 16
    y_pred = jax.random.normal(k1, (N, C, H, W), dtype=jnp.float32).astype(jnp.bfloat16)
    y_true = (jax.random.uniform(k2, (N, C, H, W)) > 0.5).astype(jnp.bfloat16)
    loss = dice_loss(y_true, y_pred)
    jax.block_until_ready(loss)
    ref = _reference(y_true, y_pred)
    assert abs(float(loss) - float(ref)) < 1e-4, (float(loss), float(ref))

    # Case 2: f32, HW=100 (< 256 -> tiny single-block path), NC=6 (not a multiple of 8).
    N2, C2, H2, W2 = 2, 3, 10, 10
    y_pred2 = jax.random.normal(k3, (N2, C2, H2, W2), dtype=jnp.float32)
    y_true2 = (jax.random.uniform(k4, (N2, C2, H2, W2)) > 0.5).astype(jnp.float32)
    loss2 = dice_loss(y_true2, y_pred2)
    jax.block_until_ready(loss2)
    ref2 = _reference(y_true2, y_pred2)
    assert abs(float(loss2) - float(ref2)) < 1e-4, (float(loss2), float(ref2))

    # Case 3: bf16, HW=5120 with forced tk=2048 -> 3 K tiles including a masked
    # remainder tile; exercises the streaming fori-loop accumulation path.
    N3, C3, H3, W3 = 2, 1, 64, 80
    y_pred3 = jax.random.normal(k5, (N3, C3, H3, W3), dtype=jnp.float32).astype(jnp.bfloat16)
    y_true3 = (jax.random.uniform(k6, (N3, C3, H3, W3)) > 0.5).astype(jnp.bfloat16)
    loss3 = dice_loss(y_true3, y_pred3, tk=2048)
    jax.block_until_ready(loss3)
    ref3 = _reference(y_true3, y_pred3)
    assert abs(float(loss3) - float(ref3)) < 1e-4, (float(loss3), float(ref3))

    print("KERNEL_OK")
</pallas_src>

<mosaic_0001>
module attributes {stable_mosaic.version = 11 : i64} {
  func.func @_dice_stream_kernel(%arg0: i32, %arg1: i32, %arg2: memref<2x256xbf16, #tpu.memory_space<vmem>>, %arg3: memref<2x256xbf16, #tpu.memory_space<vmem>>, %arg4: memref<2x128xf32, #tpu.memory_space<vmem>>, %arg5: memref<2x128xf32, #tpu.memory_space<vmem>>, %arg6: memref<2x128xf32, #tpu.memory_space<vmem>>) attributes {dimension_semantics = [#tpu.dimension_semantics<parallel>, #tpu.dimension_semantics<arbitrary>], iteration_bounds = array<i64: 1, 1>, scalar_prefetch = 0 : i64, scratch_operands = 2 : i64, tpu.core_type = #tpu.core_type<tc>, window_params = [{transform_indices = @transform_0, window_bounds = array<i64: 2, 256>}, {transform_indices = @transform_1, window_bounds = array<i64: 2, 256>}, {transform_indices = @transform_2, window_bounds = array<i64: 2, 128>}]} {
    %c0_i32 = arith.constant 0 : i32
    %0 = arith.cmpi eq, %arg1, %c0_i32 : i32
    %1 = arith.extui %0 : i1 to i32
    %c0_i32_0 = arith.constant 0 : i32
    %2 = arith.cmpi ne, %1, %c0_i32_0 : i32
    scf.if %2 {
      %cst_22 = arith.constant 0.000000e+00 : f32
      %54 = vector.broadcast %cst_22 : f32 to vector<2x128xf32>
      %c0_23 = arith.constant 0 : index
      %c0_24 = arith.constant 0 : index
      %55 = vector.load %arg5[%c0_23, %c0_24] : memref<2x128xf32, #tpu.memory_space<vmem>>, vector<2x128xf32>
      tpu.vector_store %arg5[%c0_23, %c0_24], %54 {strides = array<i32>} : memref<2x128xf32, #tpu.memory_space<vmem>>, vector<2x128xf32>,
      %cst_25 = arith.constant 0.000000e+00 : f32
      %56 = vector.broadcast %cst_25 : f32 to vector<2x128xf32>
      %c0_26 = arith.constant 0 : index
      %c0_27 = arith.constant 0 : index
      %57 = vector.load %arg6[%c0_26, %c0_27] : memref<2x128xf32, #tpu.memory_space<vmem>>, vector<2x128xf32>
      tpu.vector_store %arg6[%c0_26, %c0_27], %56 {strides = array<i32>} : memref<2x128xf32, #tpu.memory_space<vmem>>, vector<2x128xf32>,
    } else {
    }
    %cst = arith.constant 0.000000e+00 : f32
    %3 = vector.broadcast %cst : f32 to vector<2x128xf32>
    %c0_i32_1 = arith.constant 0 : i32
    %c256_i32 = arith.constant 256 : i32
    %4 = arith.muli %c0_i32_1, %c256_i32 : i32
    %5 = tpu.assume_multiple %4, 128 : i32
    %c256_i32_2 = arith.constant 256 : i32
    %6 = arith.muli %c0_i32_1, %c256_i32_2 : i32
    %c128_i32 = arith.constant 128 : i32
    %7 = arith.addi %6, %c128_i32 : i32
    %8 = tpu.assume_multiple %7, 128 : i32
    %c0 = arith.constant 0 : index
    %9 = arith.index_cast %5 : i32 to index
    %10 = vector.load %arg2[%c0, %9] : memref<2x256xbf16, #tpu.memory_space<vmem>>, vector<2x128xbf16>
    %11 = arith.extf %10 : vector<2x128xbf16> to vector<2x128xf32>
    %c0_3 = arith.constant 0 : index
    %12 = arith.index_cast %8 : i32 to index
    %13 = vector.load %arg2[%c0_3, %12] : memref<2x256xbf16, #tpu.memory_space<vmem>>, vector<2x128xbf16>
    %14 = arith.extf %13 : vector<2x128xbf16> to vector<2x128xf32>
    %c0_4 = arith.constant 0 : index
    %15 = arith.index_cast %5 : i32 to index
    %16 = vector.load %arg3[%c0_4, %15] : memref<2x256xbf16, #tpu.memory_space<vmem>>, vector<2x128xbf16>
    %17 = arith.extf %16 : vector<2x128xbf16> to vector<2x128xf32>
    %cst_5 = arith.constant 5.000000e-01 : f32
    %18 = vector.broadcast %cst_5 : f32 to vector<2x128xf32>
    %19 = arith.mulf %18, %17 : vector<2x128xf32>
    %20 = math.tanh %19 : vector<2x128xf32>
    %cst_6 = arith.constant 5.000000e-01 : f32
    %21 = vector.broadcast %cst_6 : f32 to vector<2x128xf32>
    %22 = arith.mulf %21, %20 : vector<2x128xf32>
    %cst_7 = arith.constant 5.000000e-01 : f32
    %23 = vector.broadcast %cst_7 : f32 to vector<2x128xf32>
    %24 = arith.addf %22, %23 : vector<2x128xf32>
    %c0_8 = arith.constant 0 : index
    %25 = arith.index_cast %8 : i32 to index
    %26 = vector.load %arg3[%c0_8, %25] : memref<2x256xbf16, #tpu.memory_space<vmem>>, vector<2x128xbf16>
    %27 = arith.extf %26 : vector<2x128xbf16> to vector<2x128xf32>
    %cst_9 = arith.constant 5.000000e-01 : f32
    %28 = vector.broadcast %cst_9 : f32 to vector<2x128xf32>
    %29 = arith.mulf %28, %27 : vector<2x128xf32>
    %30 = math.tanh %29 : vector<2x128xf32>
    %cst_10 = arith.constant 5.000000e-01 : f32
    %31 = vector.broadcast %cst_10 : f32 to vector<2x128xf32>
    %32 = arith.mulf %31, %30 : vector<2x128xf32>
    %cst_11 = arith.constant 5.000000e-01 : f32
    %33 = vector.broadcast %cst_11 : f32 to vector<2x128xf32>
    %34 = arith.addf %32, %33 : vector<2x128xf32>
    %35 = arith.mulf %11, %24 : vector<2x128xf32>
    %36 = arith.addf %3, %35 : vector<2x128xf32>
    %37 = arith.mulf %14, %34 : vector<2x128xf32>
    %38 = arith.addf %3, %37 : vector<2x128xf32>
    %39 = arith.addf %11, %24 : vector<2x128xf32>
    %40 = arith.addf %3, %39 : vector<2x128xf32>
    %41 = arith.addf %14, %34 : vector<2x128xf32>
    %42 = arith.addf %3, %41 : vector<2x128xf32>
    %c1_i32 = arith.constant 1 : i32
    %c0_12 = arith.constant 0 : index
    %c0_13 = arith.constant 0 : index
    %43 = vector.load %arg5[%c0_12, %c0_13] : memref<2x128xf32, #tpu.memory_space<vmem>>, vector<2x128xf32>
    %44 = arith.addf %36, %38 : vector<2x128xf32>
    %45 = arith.addf %43, %44 : vector<2x128xf32>
    %c0_14 = arith.constant 0 : index
    %c0_15 = arith.constant 0 : index
    %46 = vector.load %arg5[%c0_14, %c0_15] : memref<2x128xf32, #tpu.memory_space<vmem>>, vector<2x128xf32>
    tpu.vector_store %arg5[%c0_14, %c0_15], %45 {strides = array<i32>} : memref<2x128xf32, #tpu.memory_space<vmem>>, vector<2x128xf32>,
    %c0_16 = arith.constant 0 : index
    %c0_17 = arith.constant 0 : index
    %47 = vector.load %arg6[%c0_16, %c0_17] : memref<2x128xf32, #tpu.memory_space<vmem>>, vector<2x128xf32>
    %48 = arith.addf %40, %42 : vector<2x128xf32>
    %49 = arith.addf %47, %48 : vector<2x128xf32>
    %c0_18 = arith.constant 0 : index
    %c0_19 = arith.constant 0 : index
    %50 = vector.load %arg6[%c0_18, %c0_19] : memref<2x128xf32, #tpu.memory_space<vmem>>, vector<2x128xf32>
    tpu.vector_store %arg6[%c0_18, %c0_19], %49 {strides = array<i32>} : memref<2x128xf32, #tpu.memory_space<vmem>>, vector<2x128xf32>,
    %c0_i32_20 = arith.constant 0 : i32
    %51 = arith.cmpi eq, %arg1, %c0_i32_20 : i32
    %52 = arith.extui %51 : i1 to i32
    %c0_i32_21 = arith.constant 0 : i32
    %53 = arith.cmpi ne, %52, %c0_i32_21 : i32
    scf.if %53 {
      %c0_22 = arith.constant 0 : index
      %c0_23 = arith.constant 0 : index
      %54 = vector.load %arg5[%c0_22, %c0_23] : memref<2x128xf32, #tpu.memory_space<vmem>>, vector<2x128xf32>
      %cst_24 = arith.constant dense<0.000000e+00> : vector<2xf32>
      %55 = vector.multi_reduction <add>, %54, %cst_24 [1] : vector<2x128xf32> to vector<2xf32>
      %56 = vector.shape_cast %55 : vector<2xf32> to vector<2x1xf32>
      %c0_25 = arith.constant 0 : index
      %c0_26 = arith.constant 0 : index
      %57 = vector.load %arg6[%c0_25, %c0_26] : memref<2x128xf32, #tpu.memory_space<vmem>>, vector<2x128xf32>
      %cst_27 = arith.constant dense<0.000000e+00> : vector<2xf32>
      %58 = vector.multi_reduction <add>, %57, %cst_27 [1] : vector<2x128xf32> to vector<2xf32>
      %59 = vector.shape_cast %58 : vector<2xf32> to vector<2x1xf32>
      %cst_28 = arith.constant 2.000000e+00 : f32
      %60 = vector.broadcast %cst_28 : f32 to vector<2x1xf32>
      %61 = arith.mulf %60, %56 : vector<2x1xf32>
      %cst_29 = arith.constant 9.99999997E-7 : f32
      %62 = vector.broadcast %cst_29 : f32 to vector<2x1xf32>
      %63 = arith.addf %61, %62 : vector<2x1xf32>
      %cst_30 = arith.constant 9.99999997E-7 : f32
      %64 = vector.broadcast %cst_30 : f32 to vector<2x1xf32>
      %65 = arith.addf %59, %64 : vector<2x1xf32>
      %66 = arith.divf %63, %65 : vector<2x1xf32>
      %cst_31 = arith.constant 0.000000e+00 : f32
      %cst_32 = arith.constant 1.000000e+00 : f32
      %67 = vector.broadcast %cst_31 : f32 to vector<2x1xf32>
      %68 = arith.maximumf %67, %66 : vector<2x1xf32>
      %69 = vector.broadcast %cst_32 : f32 to vector<2x1xf32>
      %70 = arith.minimumf %69, %68 : vector<2x1xf32>
      %cst_33 = arith.constant 1.000000e+00 : f32
      %71 = vector.broadcast %cst_33 : f32 to vector<2x1xf32>
      %72 = arith.subf %71, %70 : vector<2x1xf32>
      %73 = vector.shape_cast %72 : vector<2x1xf32> to vector<2x1xf32>
      %74 = vector.broadcast %73 : vector<2x1xf32> to vector<2x128xf32>
      %c0_34 = arith.constant 0 : index
      %c0_35 = arith.constant 0 : index
      %75 = vector.load %arg4[%c0_34, %c0_35] : memref<2x128xf32, #tpu.memory_space<vmem>>, vector<2x128xf32>
      tpu.vector_store %arg4[%c0_34, %c0_35], %74 {strides = array<i32>} : memref<2x128xf32, #tpu.memory_space<vmem>>, vector<2x128xf32>,
    } else {
    }
    return
  }
  func.func @transform_0(%arg0: i32, %arg1: i32) -> (i32, i32) {
    %c0_i32 = arith.constant 0 : i32
    return %arg0, %arg1 : i32, i32
  }
  func.func @transform_1(%arg0: i32, %arg1: i32) -> (i32, i32) {
    %c0_i32 = arith.constant 0 : i32
    return %arg0, %arg1 : i32, i32
  }
  func.func @transform_2(%arg0: i32, %arg1: i32) -> (i32, i32) {
    %c0_i32 = arith.constant 0 : i32
    %c0_i32_0 = arith.constant 0 : i32
    return %arg0, %c0_i32 : i32, i32
  }
}

</mosaic_0001>

<llo_original>
// kernel: tpu_custom_call.1
$region0: #{tpu_custom_call.1}
  #allocation0 [shape = 'u32[]', space=smem, size = 0x4, offset = 0x4, fixed_abs, tag = 'smem constant byte address 0x4 - core index']
  #allocation1 [shape = 'u32[144,128]{1,0:T(1,128)}', space=vmem, size = 0x12000, scoped, tag = 'internal scratch']
  #allocation2 [shape = 'f32[2,128]{1,0:T(2,128)}', space=vmem, size = 0x400, scoped, tag = 'scratch operand']
  #allocation3 [shape = 'f32[2,128]{1,0:T(2,128)}', space=vmem, size = 0x400, scoped, tag = 'scratch operand']
  %s0 = inlined_call_operand.hbm [shape: bf16[2,256], index: 0, kind: input, shape index: {}]
  %s1 = inlined_call_operand.hbm [shape: bf16[2,256], index: 1, kind: input, shape index: {}]
  %s2 = inlined_call_operand.hbm [shape: f32[2,128], index: 2, kind: output, shape index: {}]
  %s3 = sld [smem:[#allocation0]]
  $region34: #{tpu_custom_call.1} parent=0
    _
  %s5 = ssub.s32 1, %s3
  %s6 = scalar_select 0, %s5, %s3
  $region1: #{tpu_custom_call.1} parent=0
    #allocation4 [shape = 'u8[1024]{0}', space=vmem, size = 0x400, scoped, tag = 'input window, operand 0, single buffered']
    #allocation5 [shape = 's32[1]{0}', space=sflag, size = 0x4, scoped, tag = 'scoped memory for tpu_custom_call.1']
    #allocation6 [shape = 's32[1]{0}', space=sflag, size = 0x4, scoped, tag = 'scoped memory for tpu_custom_call.1']
    #allocation7 [shape = 'u8[1024]{0}', space=vmem, size = 0x400, scoped, tag = 'input window, operand 1, single buffered']
    #allocation8 [shape = 's32[1]{0}', space=sflag, size = 0x4, scoped, tag = 'scoped memory for tpu_custom_call.1']
    #allocation9 [shape = 'u8[1024]{0}', space=vmem, size = 0x400, scoped, tag = 'output window, operand 0, single buffered']
    %7 = vsyncpa [#allocation5], 0
    %8 = vsyncpa [#allocation8], 0
    %9 = vsyncpa [#allocation6], 0
    // Predicated region
    $region2: #{tpu_custom_call.1} parent=1 // pred_check
      _
    $region3: #{tpu_custom_call.1} parent=1 // pred_check_branch
      %11 = sbr.rel (0) target = $region5
    $region4: #{tpu_custom_call.1} parent=1 // pred_region
      %s13 = ssub.s32 32, 32
      %14 = vsyncadd [#allocation5], %s13
      %s16 = sshll.u32 [#allocation4], 4
      %s17 = int_to_ptr.vmem [resolvable:$true] %s16
      %19 = dma.hbm_to_vmem [thread:$0]  %s0, 32, %s17, [#allocation5]
    $region5: #{tpu_custom_call.1} parent=1 // pred_fallthru
      _
    // Predicated region
    $region6: #{tpu_custom_call.1} parent=1 // pred_check
      _
    $region7: #{tpu_custom_call.1} parent=1 // pred_check_branch
      %21 = sbr.rel (0) target = $region9
    $region8: #{tpu_custom_call.1} parent=1 // pred_region
      %s23 = ssub.s32 32, 32
      %24 = vsyncadd [#allocation8], %s23
      %s26 = sshll.u32 [#allocation7], 4
      %s27 = int_to_ptr.vmem [resolvable:$true] %s26
      %29 = dma.hbm_to_vmem [thread:$0]  %s1, 32, %s27, [#allocation8]
    $region9: #{tpu_custom_call.1} parent=1 // pred_fallthru
      _
    // Predicated region
    $region10: #{tpu_custom_call.1} parent=1 // pred_check
      _
    $region11: #{tpu_custom_call.1} parent=1 // pred_check_branch
      %31 = sbr.rel (0) target = $region13
    $region12: #{tpu_custom_call.1} parent=1 // pred_region
      %32 = dma.done [#allocation5], 32
    $region13: #{tpu_custom_call.1} parent=1 // pred_fallthru
      _
    // Predicated region
    $region14: #{tpu_custom_call.1} parent=1 // pred_check
      _
    $region15: #{tpu_custom_call.1} parent=1 // pred_check_branch
      %34 = sbr.rel (0) target = $region17
    $region16: #{tpu_custom_call.1} parent=1 // pred_region
      %35 = dma.done [#allocation8], 32
    $region17: #{tpu_custom_call.1} parent=1 // pred_fallthru
      _
    %p36 = scmp.eq.s32.totalorder 0, 0
    // Predicated region
    $region18: #{tpu_custom_call.1} parent=1 // pred_check
      %p37 = pneg %p36
    $region19: #{tpu_custom_call.1} parent=1 // pred_check_branch
      %39 = sbr.rel (%p37) target = $region21
    $region20: #{tpu_custom_call.1} parent=1 // pred_region
      %40 = vst [vmem:[#allocation2] sm:$0x3] 0.0
      %41 = vst [vmem:[#allocation3] sm:$0x3] 0.0
    $region21: #{tpu_custom_call.1} parent=1 // pred_fallthru
      _
    %v42 = vld [vmem:[#allocation4] sm:$0x1]
    %v43 = vunpack.c.l.bf16 %v42
    %s44 = scalar_lea.vmem [#allocation4], 1
    %v45 = vld [vmem:[%s44] sm:$0x1]
    %v46 = vunpack.c.l.bf16 %v45
    %v47 = vld [vmem:[#allocation7] sm:$0x1]
    %v48 = vunpack.c.l.bf16 %v47
    %v49 = vmul.f32 %v48, 0.5
    %v50 = vtanh.pop %v49
    %v51 = vmul.f32 %v50, 0.5
    %v52 = vadd.f32 %v51, 0.5
    %s53 = scalar_lea.vmem [#allocation7], 1
    %v54 = vld [vmem:[%s53] sm:$0x1]
    %v55 = vunpack.c.l.bf16 %v54
    %v56 = vmul.f32 %v55, 0.5
    %v57 = vtanh.pop %v56
    %v58 = vmul.f32 %v57, 0.5
    %v59 = vadd.f32 %v58, 0.5
    %v60 = vmul.f32 %v43, %v52
    %v61 = vadd.f32 %v60, 0.0
    %v62 = vmul.f32 %v46, %v59
    %v63 = vadd.f32 %v62, 0.0
    %v64 = vadd.f32 %v43, %v52
    %v65 = vadd.f32 %v64, 0.0
    %v66 = vadd.f32 %v46, %v59
    %v67 = vadd.f32 %v66, 0.0
    %v68 = vld [vmem:[#allocation2] sm:$0x3]
    %v69 = vadd.f32 %v61, %v63
    %v70 = vadd.f32 %v68, %v69
    %71 = vst [vmem:[#allocation2] sm:$0x3] %v70
    %v72 = vld [vmem:[#allocation3] sm:$0x3]
    %v73 = vadd.f32 %v65, %v67
    %v74 = vadd.f32 %v72, %v73
    %75 = vst [vmem:[#allocation3] sm:$0x3] %v74
    // Predicated region
    $region22: #{tpu_custom_call.1} parent=1 // pred_check
      %p76 = pneg %p36
    $region23: #{tpu_custom_call.1} parent=1 // pred_check_branch
      %78 = sbr.rel (%p76) target = $region25
    $region24: #{tpu_custom_call.1} parent=1 // pred_region
      %v79 = vld [vmem:[#allocation2] sm:$0x3]
      %vm80 = vcmask 1041408
      %v81 = vsel %vm80, %v79, 0.0
      %82 = vadd.xlane.f32.xlu0 %v81
      %v83 = vpop.xlane.xlu0 %82
      %v84 = vld [vmem:[#allocation3] sm:$0x3]
      %v85 = vsel %vm80, %v84, 0.0
      %86 = vadd.xlane.f32.xlu0 %v85
      %v87 = vpop.xlane.xlu0 %86
      %v88 = vmul.f32 %v83, 2.0
      %v89 = vadd.f32 %v88, 1e-06
      %v90 = vadd.f32 %v87, 1e-06
      %v91 = vrcp.pop %v90
      %v92 = vmul.f32 %v89, %v91
      %v93 = vmax.f32 %v92, 0.0
      %v94 = vmin.f32 %v93, 1.0
      %v95 = vsub.f32 1.0, %v94
      %96 = vst [vmem:[#allocation9] sm:$0x3] %v95
    $region25: #{tpu_custom_call.1} parent=1 // pred_fallthru
      _
    // Predicated region
    $region26: #{tpu_custom_call.1} parent=1 // pred_check
      _
    $region27: #{tpu_custom_call.1} parent=1 // pred_check_branch
      %98 = sbr.rel (0) target = $region29
    $region28: #{tpu_custom_call.1} parent=1 // pred_region
      %s100 = ssub.s32 32, 32
      %101 = vsyncadd [#allocation6], %s100
      %s103 = sshll.u32 [#allocation9], 4
      %s104 = int_to_ptr.vmem [resolvable:$true] %s103
      %106 = dma.vmem_to_hbm [thread:$0]  %s104, 32, %s2, [#allocation6]
    $region29: #{tpu_custom_call.1} parent=1 // pred_fallthru
      _
    // Predicated region
    $region30: #{tpu_custom_call.1} parent=1 // pred_check
      _
    $region31: #{tpu_custom_call.1} parent=1 // pred_check_branch
      %108 = sbr.rel (0) target = $region33
    $region32: #{tpu_custom_call.1} parent=1 // pred_region
      %109 = dma.done [#allocation6], 32
    $region33: #{tpu_custom_call.1} parent=1 // pred_fallthru
      _
    %110 = vsyncpa [#allocation5], 1
    %111 = vsyncpa [#allocation8], 1
    %112 = vsyncpa [#allocation6], 1

</llo_original>
